<compile_context>
chip_gen: v7x
topology: tpu7x:2x2x1
jax: 0.10.0
libtpu: 0.0.40
codegen_flags: <defaults>
</compile_context>

<pallas_src>
import jax
import jax.numpy as jnp
from jax.experimental import pallas as pl
from jax.experimental.pallas import tpu as pltpu


def _round_up(x, m):
    return (x + m - 1) // m * m


# ---------------------------------------------------------------------------
# Prologue kernel: h = feat @ W  (used when out_size <= in_size, so the big
# N^2 aggregation streams the narrower projected features).
# ---------------------------------------------------------------------------
def _proj_kernel(feat_ref, w_ref, h_ref):
    h_ref[...] = jnp.dot(feat_ref[...], w_ref[...],
                         preferred_element_type=jnp.float32).astype(h_ref.dtype)


# ---------------------------------------------------------------------------
# Aggregation kernel (project-first path):  out = adj @ h + bias
#   grid = (dst row tiles, src/K tiles);  K is the reduction axis.
# ---------------------------------------------------------------------------
def _agg_kernel_projected(nz_ref, adj_ref, h_ref, b_ref, out_ref, acc_ref):
    i = pl.program_id(0)
    k = pl.program_id(1)

    @pl.when(k == 0)
    def _():
        acc_ref[...] = jnp.zeros_like(acc_ref)

    @pl.when(nz_ref[i, k] != 0)            # skip all-zero adjacency blocks
    def _():
        acc_ref[...] += jnp.dot(adj_ref[...], h_ref[...],
                                preferred_element_type=jnp.float32)

    @pl.when(k == pl.num_programs(1) - 1)
    def _():
        out_ref[...] = (acc_ref[...] + b_ref[...]).astype(out_ref.dtype)


# ---------------------------------------------------------------------------
# Aggregation kernel (aggregate-first path, out_size > in_size):
#   acc += adj @ feat over K, then out = acc @ W + bias at the last K step.
# ---------------------------------------------------------------------------
def _agg_kernel_fused(nz_ref, adj_ref, feat_ref, w_ref, b_ref, out_ref, acc_ref):
    i = pl.program_id(0)
    k = pl.program_id(1)

    @pl.when(k == 0)
    def _():
        acc_ref[...] = jnp.zeros_like(acc_ref)

    @pl.when(nz_ref[i, k] != 0)            # skip all-zero adjacency blocks
    def _():
        acc_ref[...] += jnp.dot(adj_ref[...], feat_ref[...],
                                preferred_element_type=jnp.float32)

    @pl.when(k == pl.num_programs(1) - 1)
    def _():
        res = jnp.dot(acc_ref[...].astype(w_ref.dtype), w_ref[...],
                      preferred_element_type=jnp.float32)
        out_ref[...] = (res + b_ref[...]).astype(out_ref.dtype)


def _vmem_limit(tile_n, tile_k, x_w, out_p, acc_w, compute_dtype):
    it = jnp.dtype(compute_dtype).itemsize
    est = (2 * (tile_n * tile_k * it          # adj double-buffer
                + tile_k * x_w * it           # feature stream double-buffer
                + tile_n * out_p * 4)         # output double-buffer
           + tile_n * acc_w * 4               # accumulator scratch
           + 2 * (x_w * out_p * it + out_p * 4))  # weight / bias buffers
    est = int(est * 1.5) + (4 << 20)          # headroom
    return max(16 << 20, min(est, 64 << 20))  # stay within v7x's 64 MiB VMEM


def gcn_forward(adj, feat, weight, bias, *, tile_n=256, tile_k=512,
                compute_dtype=jnp.bfloat16):
    """GCN forward: out = adj @ feat @ weight + bias.

    adj    : [N, N]      dense adjacency (edge weights / degree norm pre-folded)
    feat   : [N, in]     node features
    weight : [in, out]
    bias   : [out]
    """
    N = adj.shape[0]
    in_size, out_size = weight.shape
    out_dtype = feat.dtype

    # ---- tile sizes (clamped for small graphs; (8,128)-legal) --------------
    tile_n = min(tile_n, _round_up(N, 8))      # dst-row tile (MXU M dim)
    tile_k = min(tile_k, _round_up(N, 128))    # src / contraction tile
    n_dst = _round_up(N, tile_n)
    n_src = _round_up(N, tile_k)
    out_p = _round_up(out_size, 128)           # lane-dense output width

    # ---- pad operands (zeros in padded rows/cols are mathematically inert) -
    adj_p = jnp.zeros((n_dst, n_src), compute_dtype).at[:N, :N].set(
        adj.astype(compute_dtype))
    feat_p = jnp.zeros((n_src, in_size), compute_dtype).at[:N, :].set(
        feat.astype(compute_dtype))
    w_p = jnp.zeros((in_size, out_p), compute_dtype).at[:, :out_size].set(
        weight.astype(compute_dtype))
    b_p = jnp.zeros((1, out_p), jnp.float32).at[0, :out_size].set(
        bias.astype(jnp.float32))

    # ---- per-(row-tile, k-tile) nonzero flags for block-sparse skipping ----
    nz = (adj_p != 0).reshape(n_dst // tile_n, tile_n,
                              n_src // tile_k, tile_k)
    nz = jnp.any(nz, axis=(1, 3)).astype(jnp.int32)

    project_first = out_size <= in_size
    if project_first:
        # Prologue: h = feat @ W  (one pass over feat; narrower N^2 stream).
        h = pl.pallas_call(
            _proj_kernel,
            out_shape=jax.ShapeDtypeStruct((n_src, out_p), compute_dtype),
            grid_spec=pltpu.PrefetchScalarGridSpec(
                num_scalar_prefetch=0,
                grid=(n_src // tile_k,),
                in_specs=[
                    pl.BlockSpec((tile_k, in_size), lambda i: (i, 0)),
                    pl.BlockSpec((in_size, out_p), lambda i: (0, 0)),
                ],
                out_specs=pl.BlockSpec((tile_k, out_p), lambda i: (i, 0)),
            ),
            compiler_params=pltpu.CompilerParams(
                dimension_semantics=("parallel",)),
        )(feat_p, w_p)
        kernel = _agg_kernel_projected
        x_p, x_w = h, out_p
        acc_w = out_p
        extra_in = ()
        extra_specs = ()
        flops = 2 * n_dst * n_src * out_p
    else:
        kernel = _agg_kernel_fused
        x_p, x_w = feat_p, in_size
        acc_w = in_size
        extra_in = (w_p,)
        extra_specs = (pl.BlockSpec((in_size, out_p),
                                    lambda i, k, nz_r: (0, 0)),)
        flops = 2 * n_dst * n_src * in_size + 2 * n_dst * in_size * out_p

    bytes_accessed = int(adj_p.size * adj_p.dtype.itemsize
                         + x_p.size * x_p.dtype.itemsize
                         + n_dst * out_p * jnp.dtype(out_dtype).itemsize)

    in_specs = [
        pl.BlockSpec((tile_n, tile_k), lambda i, k, nz_r: (i, k)),   # adj rows
        pl.BlockSpec((tile_k, x_w),    lambda i, k, nz_r: (k, 0)),   # h / feat
        *extra_specs,                                                # (weight)
        pl.BlockSpec((1, out_p),       lambda i, k, nz_r: (0, 0)),   # bias
    ]

    out = pl.pallas_call(
        kernel,
        out_shape=jax.ShapeDtypeStruct((n_dst, out_p), out_dtype),
        grid_spec=pltpu.PrefetchScalarGridSpec(
            num_scalar_prefetch=1,                 # nz flags -> SMEM
            grid=(n_dst // tile_n, n_src // tile_k),
            in_specs=in_specs,
            out_specs=pl.BlockSpec((tile_n, out_p),
                                   lambda i, k, nz_r: (i, 0)),
            scratch_shapes=[pltpu.VMEM((tile_n, acc_w), jnp.float32)],
        ),
        compiler_params=pltpu.CompilerParams(
            dimension_semantics=("parallel", "arbitrary"),
            vmem_limit_bytes=_vmem_limit(tile_n, tile_k, x_w, out_p, acc_w,
                                         compute_dtype),
        ),
        cost_estimate=pl.CostEstimate(flops=flops, transcendentals=0,
                                      bytes_accessed=bytes_accessed),
    )(nz, adj_p, x_p, *extra_in, b_p)

    return out[:N, :out_size]


if __name__ == "__main__":
    key = jax.random.PRNGKey(0)
    k_adj, k_feat, k_w, k_ew, k_w2 = jax.random.split(key, 5)

    # Small synthetic graph / sizes (hid_size in __init__ is unused by forward).
    N = 16
    in_size = 8
    out_size = 8        # exercises the project-first path (out <= in)
    out_size2 = 32      # exercises the aggregate-first fused path (out > in)

    # Dense adjacency (1 if edge src->dst), plus self loops; fold edge weights.
    adj_bin = (jax.random.uniform(k_adj, (N, N)) < 0.3).astype(jnp.float32)
    adj_bin = jnp.maximum(adj_bin, jnp.eye(N, dtype=jnp.float32))
    edge_w = jax.random.uniform(k_ew, (N, N), minval=0.5, maxval=1.5)
    adj = adj_bin * edge_w
    # TODO(synk): DGL GraphConv degree normalization must be pre-folded into
    # `adj` by the caller (not enforced here), matching the dense-A formulation.

    feat = jax.random.normal(k_feat, (N, in_size), dtype=jnp.float32)

    # Parameters: xavier_uniform_ weight, zero bias (deterministic).
    bound = (6.0 / (in_size + out_size)) ** 0.5
    weight = jax.random.uniform(k_w, (in_size, out_size),
                                minval=-bound, maxval=bound, dtype=jnp.float32)
    bias = jnp.zeros((out_size,), dtype=jnp.float32)

    bound2 = (6.0 / (in_size + out_size2)) ** 0.5
    weight2 = jax.random.uniform(k_w2, (in_size, out_size2),
                                 minval=-bound2, maxval=bound2,
                                 dtype=jnp.float32)
    bias2 = jnp.zeros((out_size2,), dtype=jnp.float32)

    # f32 path (tight check), bf16 default path (loose check), fused path.
    out_f32 = jax.block_until_ready(
        gcn_forward(adj, feat, weight, bias, compute_dtype=jnp.float32))
    out_bf16 = jax.block_until_ready(
        gcn_forward(adj, feat, weight, bias))     # default bf16 MXU streams
    out_fused = jax.block_until_ready(
        gcn_forward(adj, feat, weight2, bias2, compute_dtype=jnp.float32))

    ref = (adj @ feat) @ weight + bias
    ref2 = (adj @ feat) @ weight2 + bias2

    assert out_f32.shape == (N, out_size)
    assert jnp.allclose(out_f32, ref, rtol=1e-4, atol=1e-4)
    assert jnp.allclose(out_bf16, ref, rtol=5e-2, atol=5e-2)
    assert out_fused.shape == (N, out_size2)
    assert jnp.allclose(out_fused, ref2, rtol=1e-4, atol=1e-4)

    print("KERNEL_OK")
</pallas_src>

<mosaic_0001>
module attributes {stable_mosaic.version = 11 : i64} {
  func.func @_proj_kernel(%arg0: i32, %arg1: memref<128x8xf32, #tpu.memory_space<vmem>>, %arg2: memref<8x128xf32, #tpu.memory_space<vmem>>, %arg3: memref<128x128xf32, #tpu.memory_space<vmem>>) attributes {dimension_semantics = [#tpu.dimension_semantics<parallel>], iteration_bounds = array<i64: 1>, scalar_prefetch = 0 : i64, scratch_operands = 0 : i64, tpu.core_type = #tpu.core_type<tc>, window_params = [{transform_indices = @transform_0, window_bounds = array<i64: 128, 8>}, {pipeline_mode = #tpu.pipeline_mode<synchronous>, transform_indices = @transform_1, window_bounds = array<i64: 8, 128>}, {transform_indices = @transform_2, window_bounds = array<i64: 128, 128>}]} {
    %c0 = arith.constant 0 : index
    %c0_0 = arith.constant 0 : index
    %0 = vector.load %arg1[%c0, %c0_0] : memref<128x8xf32, #tpu.memory_space<vmem>>, vector<128x8xf32>
    %c0_1 = arith.constant 0 : index
    %c0_2 = arith.constant 0 : index
    %1 = vector.load %arg2[%c0_1, %c0_2] : memref<8x128xf32, #tpu.memory_space<vmem>>, vector<8x128xf32>
    %cst = arith.constant dense<0.000000e+00> : vector<128x128xf32>
    %2 = tpu.matmul %0, %1, %cst {dimension_numbers = #tpu.dot_dimension_numbers<[1], [0], [0], [1], [0, 0, 1, 1], [], []>} : vector<128x8xf32>, vector<8x128xf32>, vector<128x128xf32> -> vector<128x128xf32>
    %c0_3 = arith.constant 0 : index
    %c0_4 = arith.constant 0 : index
    %3 = vector.load %arg3[%c0_3, %c0_4] : memref<128x128xf32, #tpu.memory_space<vmem>>, vector<128x128xf32>
    tpu.vector_store %arg3[%c0_3, %c0_4], %2 {strides = array<i32>} : memref<128x128xf32, #tpu.memory_space<vmem>>, vector<128x128xf32>,
    return
  }
  func.func @transform_0(%arg0: i32) -> (i32, i32) {
    %c0_i32 = arith.constant 0 : i32
    %c0_i32_0 = arith.constant 0 : i32
    return %arg0, %c0_i32 : i32, i32
  }
  func.func @transform_1(%arg0: i32) -> (i32, i32) {
    %c0_i32 = arith.constant 0 : i32
    %c0_i32_0 = arith.constant 0 : i32
    %c0_i32_1 = arith.constant 0 : i32
    return %c0_i32, %c0_i32_0 : i32, i32
  }
  func.func @transform_2(%arg0: i32) -> (i32, i32) {
    %c0_i32 = arith.constant 0 : i32
    %c0_i32_0 = arith.constant 0 : i32
    return %arg0, %c0_i32 : i32, i32
  }
}

</mosaic_0001>

<llo_original>
// kernel: tpu_custom_call.1
$region0: #{tpu_custom_call.1}
  #allocation0 [shape = 'u32[]', space=smem, size = 0x4, offset = 0x4, fixed_abs, tag = 'smem constant byte address 0x4 - core index']
  #allocation1 [shape = 'u32[144,128]{1,0:T(1,128)}', space=vmem, size = 0x12000, scoped, tag = 'internal scratch']
  %s0 = inlined_call_operand.vmem [shape: f32[128,8], index: 0, kind: input, shape index: {}]
  %s1 = inlined_call_operand.vmem [shape: f32[8,128], index: 1, kind: input, shape index: {}]
  %s2 = inlined_call_operand.hbm [shape: f32[128,128], index: 2, kind: output, shape index: {}]
  %s3 = sld [smem:[#allocation0]]
  $region18: #{tpu_custom_call.1} parent=0
    _
  %s5 = ssub.s32 1, %s3
  %s6 = scalar_select 0, %s5, %s3
  $region1: #{tpu_custom_call.1} parent=0
    #allocation2 [shape = 'u8[65536]{0}', space=vmem, size = 0x10000, scoped, tag = 'output window, operand 0, single buffered']
    #allocation3 [shape = 's32[1]{0}', space=sflag, size = 0x4, scoped, tag = 'scoped memory for tpu_custom_call.1']
    %7 = vsyncpa [#allocation3], 0
    // Predicated region
    $region2: #{tpu_custom_call.1} parent=1 // pred_check
      _
    $region3: #{tpu_custom_call.1} parent=1 // pred_check_branch
      %9 = sbr.rel (0) target = $region5
    $region4: #{tpu_custom_call.1} parent=1 // pred_region
      _
    $region5: #{tpu_custom_call.1} parent=1 // pred_fallthru
      _
    // Predicated region
    $region6: #{tpu_custom_call.1} parent=1 // pred_check
      _
    $region7: #{tpu_custom_call.1} parent=1 // pred_check_branch
      %11 = sbr.rel (0) target = $region9
    $region8: #{tpu_custom_call.1} parent=1 // pred_region
      _
    $region9: #{tpu_custom_call.1} parent=1 // pred_fallthru
      _
    %v12 = vld [vmem:[%s0] sm:$0xff]
    %v13 = vld [vmem:[%s0 + $0x8] sm:$0xff]
    %v14 = vld [vmem:[%s0 + $0x10] sm:$0xff]
    %v15 = vld [vmem:[%s0 + $0x18] sm:$0xff]
    %v16 = vld [vmem:[%s0 + $0x20] sm:$0xff]
    %v17 = vld [vmem:[%s0 + $0x28] sm:$0xff]
    %v18 = vld [vmem:[%s0 + $0x30] sm:$0xff]
    %v19 = vld [vmem:[%s0 + $0x38] sm:$0xff]
    %v20 = vld [vmem:[%s0 + $0x40] sm:$0xff]
    %v21 = vld [vmem:[%s0 + $0x48] sm:$0xff]
    %v22 = vld [vmem:[%s0 + $0x50] sm:$0xff]
    %v23 = vld [vmem:[%s0 + $0x58] sm:$0xff]
    %v24 = vld [vmem:[%s0 + $0x60] sm:$0xff]
    %v25 = vld [vmem:[%s0 + $0x68] sm:$0xff]
    %v26 = vld [vmem:[%s0 + $0x70] sm:$0xff]
    %v27 = vld [vmem:[%s0 + $0x78] sm:$0xff]
    %v28 = vld [vmem:[%s1] sm:$0xff]
    %vm29 = vcmask 64512
    %v31 = vsel %vm29, %v12, 0
    %v34 = vsel %vm29, %v13, 0
    %v37 = vsel %vm29, %v14, 0
    %v40 = vsel %vm29, %v15, 0
    %v43 = vsel %vm29, %v16, 0
    %v46 = vsel %vm29, %v17, 0
    %v49 = vsel %vm29, %v18, 0
    %v52 = vsel %vm29, %v19, 0
    %v55 = vsel %vm29, %v20, 0
    %v58 = vsel %vm29, %v21, 0
    %v61 = vsel %vm29, %v22, 0
    %v64 = vsel %vm29, %v23, 0
    %v67 = vsel %vm29, %v24, 0
    %v70 = vsel %vm29, %v25, 0
    %v73 = vsel %vm29, %v26, 0
    %v76 = vsel %vm29, %v27, 0
    %78 = vmatprep.subr.mxu0 0.0
    %79 = vmatpush1.msra.mxu0 %v28
    %80 = vmatprep.subr.mxu0 0.0
    %81 = vmatpush1.msra.mxu0 0.0
    %82 = vmatprep.subr.mxu0 0.0
    %83 = vmatpush1.msra.mxu0 0.0
    %84 = vmatprep.subr.mxu0 0.0
    %85 = vmatpush1.msra.mxu0 0.0
    %86 = vmatprep.subr.mxu0 0.0
    %87 = vmatpush1.msra.mxu0 0.0
    %88 = vmatprep.subr.mxu0 0.0
    %89 = vmatpush1.msra.mxu0 0.0
    %90 = vmatprep.subr.mxu0 0.0
    %91 = vmatpush1.msra.mxu0 0.0
    %92 = vmatprep.subr.mxu0 0.0
    %93 = vmatpush1.msra.mxu0 0.0
    %94 = vmatprep.subr.mxu0 0.0
    %95 = vmatpush1.msra.mxu0 0.0
    %96 = vmatprep.subr.mxu0 0.0
    %97 = vmatpush1.msra.mxu0 0.0
    %98 = vmatprep.subr.mxu0 0.0
    %99 = vmatpush1.msra.mxu0 0.0
    %100 = vmatprep.subr.mxu0 0.0
    %101 = vmatpush1.msra.mxu0 0.0
    %102 = vmatprep.subr.mxu0 0.0
    %103 = vmatpush1.msra.mxu0 0.0
    %104 = vmatprep.subr.mxu0 0.0
    %105 = vmatpush1.msra.mxu0 0.0
    %106 = vmatprep.subr.mxu0 0.0
    %107 = vmatpush1.msra.mxu0 0.0
    %108 = vmatprep.subr.mxu0 0.0
    %109 = vmatpush1.msra.mxu0 0.0
    %110 = vmatprep.subr.mxu0 0.0
    %111 = vmatpush1.msra.mxu0 0.0
    %112 = vmatprep.subr.mxu0 0.0
    %113 = vmatpush1.msra.mxu0 0.0
    %114 = vmatprep.subr.mxu0 0.0
    %115 = vmatpush1.msra.mxu0 0.0
    %116 = vmatprep.subr.mxu0 0.0
    %117 = vmatpush1.msra.mxu0 0.0
    %118 = vmatprep.subr.mxu0 0.0
    %119 = vmatpush1.msra.mxu0 0.0
    %120 = vmatprep.subr.mxu0 0.0
    %121 = vmatpush1.msra.mxu0 0.0
    %122 = vmatprep.subr.mxu0 0.0
    %123 = vmatpush1.msra.mxu0 0.0
    %124 = vmatprep.subr.mxu0 0.0
    %125 = vmatpush1.msra.mxu0 0.0
    %126 = vmatprep.subr.mxu0 0.0
    %127 = vmatpush1.msra.mxu0 0.0
    %128 = vmatprep.subr.mxu0 0.0
    %129 = vmatpush1.msra.mxu0 0.0
    %130 = vmatprep.subr.mxu0 0.0
    %131 = vmatpush1.msra.mxu0 0.0
    %132 = vmatprep.subr.mxu0 0.0
    %133 = vmatpush1.msra.mxu0 0.0
    %134 = vmatprep.subr.mxu0 0.0
    %135 = vmatpush1.msra.mxu0 0.0
    %136 = vmatprep.subr.mxu0 0.0
    %137 = vmatpush1.msra.mxu0 0.0
    %138 = vmatprep.subr.mxu0 0.0
    %139 = vmatpush1.msra.mxu0 0.0
    %140 = vmatprep.subr.mxu0 0.0
    %141 = vmatpush1.msra.mxu0 0.0
    %142 = vmatprep.mubr.f32.mxu0 0.0
    %143 = vmatmul.mubr.f32.gmra.mrb[0].mxu0 %v31
    %v144 = vpop.f32.mrb[0].mxu0
    %v145 = vadd.f32 0.0, %v144
    %v146 = vpop.f32.mrb[0].mxu0
    %147 = vmatprep.mubr.f32.mxu0 0.0
    %148 = vmatmul.mubr.f32.gmra.mrb[0].mxu0 %v34
    %v149 = vpop.f32.mrb[0].mxu0
    %v150 = vadd.f32 0.0, %v149
    %v151 = vpop.f32.mrb[0].mxu0
    %152 = vmatprep.mubr.f32.mxu0 0.0
    %153 = vmatmul.mubr.f32.gmra.mrb[0].mxu0 %v37
    %v154 = vpop.f32.mrb[0].mxu0
    %v155 = vadd.f32 0.0, %v154
    %v156 = vpop.f32.mrb[0].mxu0
    %157 = vmatprep.mubr.f32.mxu0 0.0
    %158 = vmatmul.mubr.f32.gmra.mrb[0].mxu0 %v40
    %v159 = vpop.f32.mrb[0].mxu0
    %v160 = vadd.f32 0.0, %v159
    %v161 = vpop.f32.mrb[0].mxu0
    %162 = vmatprep.mubr.f32.mxu0 0.0
    %163 = vmatmul.mubr.f32.gmra.mrb[0].mxu0 %v43
    %v164 = vpop.f32.mrb[0].mxu0
    %v165 = vadd.f32 0.0, %v164
    %v166 = vpop.f32.mrb[0].mxu0
    %167 = vmatprep.mubr.f32.mxu0 0.0
    %168 = vmatmul.mubr.f32.gmra.mrb[0].mxu0 %v46
    %v169 = vpop.f32.mrb[0].mxu0
    %v170 = vadd.f32 0.0, %v169
    %v171 = vpop.f32.mrb[0].mxu0
    %172 = vmatprep.mubr.f32.mxu0 0.0
    %173 = vmatmul.mubr.f32.gmra.mrb[0].mxu0 %v49
    %v174 = vpop.f32.mrb[0].mxu0
    %v175 = vadd.f32 0.0, %v174
    %v176 = vpop.f32.mrb[0].mxu0
    %177 = vmatprep.mubr.f32.mxu0 0.0
    %178 = vmatmul.mubr.f32.gmra.mrb[0].mxu0 %v52
    %v179 = vpop.f32.mrb[0].mxu0
    %v180 = vadd.f32 0.0, %v179
    %v181 = vpop.f32.mrb[0].mxu0
    %182 = vmatprep.mubr.f32.mxu0 0.0
    %183 = vmatmul.mubr.f32.gmra.mrb[0].mxu0 %v55
    %v184 = vpop.f32.mrb[0].mxu0
    %v185 = vadd.f32 0.0, %v184
    %v186 = vpop.f32.mrb[0].mxu0
    %187 = vmatprep.mubr.f32.mxu0 0.0
    %188 = vmatmul.mubr.f32.gmra.mrb[0].mxu0 %v58
    %v189 = vpop.f32.mrb[0].mxu0
    %v190 = vadd.f32 0.0, %v189
    %v191 = vpop.f32.mrb[0].mxu0
    %192 = vmatprep.mubr.f32.mxu0 0.0
    %193 = vmatmul.mubr.f32.gmra.mrb[0].mxu0 %v61
    %v194 = vpop.f32.mrb[0].mxu0
    %v195 = vadd.f32 0.0, %v194
    %v196 = vpop.f32.mrb[0].mxu0
    %197 = vmatprep.mubr.f32.mxu0 0.0
    %198 = vmatmul.mubr.f32.gmra.mrb[0].mxu0 %v64
    %v199 = vpop.f32.mrb[0].mxu0
    %v200 = vadd.f32 0.0, %v199
    %v201 = vpop.f32.mrb[0].mxu0
    %202 = vmatprep.mubr.f32.mxu0 0.0
    %203 = vmatmul.mubr.f32.gmra.mrb[0].mxu0 %v67
    %v204 = vpop.f32.mrb[0].mxu0
    %v205 = vadd.f32 0.0, %v204
    %v206 = vpop.f32.mrb[0].mxu0
    %207 = vmatprep.mubr.f32.mxu0 0.0
    %208 = vmatmul.mubr.f32.gmra.mrb[0].mxu0 %v70
    %v209 = vpop.f32.mrb[0].mxu0
    %v210 = vadd.f32 0.0, %v209
    %v211 = vpop.f32.mrb[0].mxu0
    %212 = vmatprep.mubr.f32.mxu0 0.0
    %213 = vmatmul.mubr.f32.gmra.mrb[0].mxu0 %v73
    %v214 = vpop.f32.mrb[0].mxu0
    %v215 = vadd.f32 0.0, %v214
    %v216 = vpop.f32.mrb[0].mxu0
    %217 = vmatprep.mubr.f32.mxu0 0.0
    %218 = vmatmul.mubr.f32.gmra.mrb[0].mxu0 %v76
    %v219 = vpop.f32.mrb[0].mxu0
    %v220 = vadd.f32 0.0, %v219
    %v221 = vpop.f32.mrb[0].mxu0
    %222 = vdwg.mxu0
    %223 = vst [vmem:[#allocation2] sm:$0xff] %v145
    %224 = vst [vmem:[#allocation2 + $0x8] sm:$0xff] %v150
    %225 = vst [vmem:[#allocation2 + $0x10] sm:$0xff] %v155
    %226 = vst [vmem:[#allocation2 + $0x18] sm:$0xff] %v160
    %227 = vst [vmem:[#allocation2 + $0x20] sm:$0xff] %v165
    %228 = vst [vmem:[#allocation2 + $0x28] sm:$0xff] %v170
    %229 = vst [vmem:[#allocation2 + $0x30] sm:$0xff] %v175
    %230 = vst [vmem:[#allocation2 + $0x38] sm:$0xff] %v180
    %231 = vst [vmem:[#allocation2 + $0x40] sm:$0xff] %v185
    %232 = vst [vmem:[#allocation2 + $0x48] sm:$0xff] %v190
    %233 = vst [vmem:[#allocation2 + $0x50] sm:$0xff] %v195
    %234 = vst [vmem:[#allocation2 + $0x58] sm:$0xff] %v200
    %235 = vst [vmem:[#allocation2 + $0x60] sm:$0xff] %v205
    %236 = vst [vmem:[#allocation2 + $0x68] sm:$0xff] %v210
    %237 = vst [vmem:[#allocation2 + $0x70] sm:$0xff] %v215
    %238 = vst [vmem:[#allocation2 + $0x78] sm:$0xff] %v220
    // Predicated region
    $region10: #{tpu_custom_call.1} parent=1 // pred_check
      _
    $region11: #{tpu_custom_call.1} parent=1 // pred_check_branch
      %240 = sbr.rel (0) target = $region13
    $region12: #{tpu_custom_call.1} parent=1 // pred_region
      %s242 = ssub.s32 2048, 2048
      %243 = vsyncadd [#allocation3], %s242
      %s244 = sshll.u32 [#allocation2], 4
      %s245 = int_to_ptr.vmem [resolvable:$true] %s244
      %250 = dma.vmem_to_hbm [thread:$0]  %s245, 2048, %s2, [#allocation3], 128, 128, 8
    $region13: #{tpu_custom_call.1} parent=1 // pred_fallthru
      _
    // Predicated region
    $region14: #{tpu_custom_call.1} parent=1 // pred_check
      _
    $region15: #{tpu_custom_call.1} parent=1 // pred_check_branch
      %252 = sbr.rel (0) target = $region17
    $region16: #{tpu_custom_call.1} parent=1 // pred_region
      %253 = dma.done [#allocation3], 2048
    $region17: #{tpu_custom_call.1} parent=1 // pred_fallthru
      _
    %254 = vsyncpa [#allocation3], 1

</llo_original>
